<compile_context>
chip_gen: v7x
topology: tpu7x:2x2x1
jax: 0.10.0
libtpu: 0.0.40
codegen_flags: <defaults>
</compile_context>

<pallas_src>
import math

import jax
import jax.numpy as jnp
from jax.experimental import pallas as pl
from jax.experimental.pallas import tpu as pltpu

_SUBLANE = 8
_LANE = 128


def _round_up(a: int, b: int) -> int:
    return (a + b - 1) // b * b


def _pick_tile(dim: int, target: int, granule: int) -> int:
    """Largest multiple of `granule` that divides `dim` (a granule multiple) and is <= target."""
    target = min(target, dim)
    best = granule
    t = granule
    while t <= target:
        if dim % t == 0:
            best = t
        t += granule
    return best


def _kan_linear_kernel(x_ref, w_ref, b_ref, o_ref):
    # x_ref: (tm, tk) bf16 ternary, w_ref: (tk, tn) bf16, b_ref: (1, tn) f32,
    # o_ref: (tm, tn) f32 -- resident across the k axis (same output block for all k),
    # so it doubles as the accumulator and is written back to HBM exactly once.
    k = pl.program_id(2)

    @pl.when(k == 0)
    def _init():
        o_ref[...] = jnp.broadcast_to(b_ref[...], o_ref.shape)

    o_ref[...] += jnp.dot(x_ref[...], w_ref[...], preferred_element_type=jnp.float32)


def prepare_kan_linear_params(weight, bias=None):
    """One-time parameter layout work (hoist out of the per-call hot path):
    pad to lane granularity, pre-transpose the weight to (Kp, Np), cast it to bf16."""
    N, K = weight.shape
    Kp = _round_up(K, _LANE)
    Np = _round_up(N, _LANE)
    w_t = jnp.pad(weight, ((0, Np - N), (0, Kp - K))).T.astype(jnp.bfloat16)  # (Kp, Np)
    if bias is None:
        bias = jnp.zeros((N,), jnp.float32)
    b_p = jnp.pad(bias.astype(jnp.float32), (0, Np - N)).reshape(1, Np)
    return w_t, b_p, (N, K)


def kan_linear_prepared(x, w_t, b_p, shape_nk, threshold=0.5, *, tm=256, tn=512, tk=1024):
    """Fused KANLinear forward using pre-prepared (transposed, padded, bf16) weights.

    x:       (M, K)   float32
    w_t:     (Kp, Np) bfloat16   (from prepare_kan_linear_params)
    b_p:     (1, Np)  float32
    returns  (M, N)   float32
    """
    M, K = x.shape
    N, K2 = shape_nk
    assert K == K2, "weight/in_features mismatch"
    Kp, Np = w_t.shape

    # Ternarize in f32 FIRST (strict compares exactly match TernaryActivationFunction),
    # then cast: {-1, 0, +1} is exact in bf16, so the MXU lhs numerics are exact.
    thr = float(threshold)
    tern = (jnp.where(x > thr, 1.0, 0.0)
            - jnp.where(x < -thr, 1.0, 0.0)).astype(jnp.bfloat16)

    Mp = _round_up(M, _SUBLANE)
    x_p = jnp.pad(tern, ((0, Mp - M), (0, Kp - K)))  # zero padding ternarizes to 0 -> exact

    # Tiles: largest lane-aligned divisors of the (lane-padded) dims, capped at the targets.
    tm = _pick_tile(Mp, tm, _SUBLANE)
    tn = _pick_tile(Np, tn, _LANE)
    tk = _pick_tile(Kp, tk, _LANE)

    # Megacore (v7x dual-TC): try to expose >= 2 parallel grid steps when the problem allows.
    if (Mp // tm) * (Np // tn) < 2:
        if Np // _LANE >= 2:
            tn = _pick_tile(Np, max(tn // 2, _LANE), _LANE)
        elif Mp // _SUBLANE >= 2:
            tm = _pick_tile(Mp, max(tm // 2, _SUBLANE), _SUBLANE)

    grid = (Mp // tm, Np // tn, Kp // tk)

    # Double-buffered VMEM footprint: bf16 x + bf16 W + f32 out (output is the accumulator).
    vmem_bytes = 2 * (tm * tk * 2 + tk * tn * 2 + tm * tn * 4 + tn * 4)
    vmem_limit = int(min(max(2 * vmem_bytes, 16 << 20), 48 << 20))  # stays under v7x 64 MiB

    out_p = pl.pallas_call(
        _kan_linear_kernel,
        out_shape=jax.ShapeDtypeStruct((Mp, Np), jnp.float32),
        grid_spec=pltpu.PrefetchScalarGridSpec(
            num_scalar_prefetch=0,
            grid=grid,
            in_specs=[
                pl.BlockSpec((tm, tk), lambda i, j, k: (i, k)),  # ternary x tile (bf16)
                pl.BlockSpec((tk, tn), lambda i, j, k: (k, j)),  # W^T tile (bf16)
                pl.BlockSpec((1, tn), lambda i, j, k: (0, j)),   # bias tile (f32)
            ],
            out_specs=pl.BlockSpec((tm, tn), lambda i, j, k: (i, j)),
        ),
        compiler_params=pltpu.CompilerParams(
            dimension_semantics=("parallel", "parallel", "arbitrary"),
            vmem_limit_bytes=vmem_limit,
        ),
    )(x_p, w_t, b_p)

    return out_p[:M, :N].astype(x.dtype)


def kan_linear(x, weight, bias=None, threshold=0.5, *, tm=256, tn=512, tk=1024):
    """Convenience wrapper (prepares params per call). In a real model, call
    prepare_kan_linear_params once at init and reuse kan_linear_prepared in the hot path."""
    w_t, b_p, shape_nk = prepare_kan_linear_params(weight, bias)
    return kan_linear_prepared(x, w_t, b_p, shape_nk, threshold, tm=tm, tn=tn, tk=tk)


def init_kan_linear_params(key, in_features, out_features):
    """Matches KANLinear.reset_parameters:
    kaiming_uniform_(a=sqrt(5)) -> uniform(-1/sqrt(fan_in), +1/sqrt(fan_in)) for weight,
    uniform(-1/sqrt(fan_in), +1/sqrt(fan_in)) for bias."""
    kw, kb = jax.random.split(key)
    bound = 1.0 / math.sqrt(in_features)
    weight = jax.random.uniform(
        kw, (out_features, in_features), jnp.float32, minval=-bound, maxval=bound
    )
    bias = jax.random.uniform(
        kb, (out_features,), jnp.float32, minval=-bound, maxval=bound
    )
    return weight, bias


def _reference(x, weight, bias, threshold=0.5, weight_dtype=jnp.float32):
    tern = jnp.where(x > threshold, 1.0, jnp.where(x < -threshold, -1.0, 0.0)).astype(jnp.float32)
    w = weight.astype(weight_dtype).astype(jnp.float32)
    return tern @ w.T + bias


if __name__ == "__main__":
    key = jax.random.PRNGKey(0)
    k_x, k_p = jax.random.split(key)

    # TODO(synk): backward (straight-through estimator in TernaryActivationFunction.backward)
    # is not part of the forward pass and is not implemented here.
    batch, in_features, out_features = 8, 32, 64
    threshold = 0.5

    x = jax.random.normal(k_x, (batch, in_features), jnp.float32)
    weight, bias = init_kan_linear_params(k_p, in_features, out_features)

    # One-time parameter prep (hoisted out of the hot path), then the fused forward.
    w_t, b_p, shape_nk = prepare_kan_linear_params(weight, bias)
    out = kan_linear_prepared(x, w_t, b_p, shape_nk, threshold)
    out = jax.block_until_ready(out)
    assert out.shape == (batch, out_features)

    # Matched-precision reference: kernel feeds bf16 weights to the MXU (ternary lhs is
    # exact in bf16), so compare against an f32 matmul with bf16-rounded weights.
    ref_bf16w = _reference(x, weight, bias, threshold, weight_dtype=jnp.bfloat16)
    assert jnp.allclose(out, ref_bf16w, atol=1e-4, rtol=1e-4), "mismatch vs bf16-weight reference"

    # Loose sanity check vs pure-f32 reference (bf16 weight rounding only).
    ref_f32 = _reference(x, weight, bias, threshold, weight_dtype=jnp.float32)
    assert jnp.allclose(out, ref_f32, atol=5e-2, rtol=5e-2), "mismatch vs f32 reference"

    # Convenience path smoke test.
    out2 = jax.block_until_ready(kan_linear(x, weight, bias, threshold))
    assert jnp.allclose(out, out2)

    print("KERNEL_OK")
</pallas_src>

<mosaic_0001>
module attributes {stable_mosaic.version = 11 : i64} {
  func.func @_kan_linear_kernel(%arg0: i32, %arg1: i32, %arg2: i32, %arg3: memref<8x128xbf16, #tpu.memory_space<vmem>>, %arg4: memref<128x128xbf16, #tpu.memory_space<vmem>>, %arg5: memref<1x128xf32, #tpu.memory_space<vmem>>, %arg6: memref<8x128xf32, #tpu.memory_space<vmem>>) attributes {dimension_semantics = [#tpu.dimension_semantics<parallel>, #tpu.dimension_semantics<parallel>, #tpu.dimension_semantics<arbitrary>], iteration_bounds = array<i64: 1, 1, 1>, scalar_prefetch = 0 : i64, scratch_operands = 0 : i64, tpu.core_type = #tpu.core_type<tc>, window_params = [{transform_indices = @transform_0, window_bounds = array<i64: 8, 128>}, {transform_indices = @transform_1, window_bounds = array<i64: 128, 128>}, {transform_indices = @transform_2, window_bounds = array<i64: 1, 128>}, {transform_indices = @transform_3, window_bounds = array<i64: 8, 128>}]} {
    %c0_i32 = arith.constant 0 : i32
    %0 = arith.cmpi eq, %arg2, %c0_i32 : i32
    %1 = arith.extui %0 : i1 to i32
    %c0_i32_0 = arith.constant 0 : i32
    %2 = arith.cmpi ne, %1, %c0_i32_0 : i32
    scf.if %2 {
      %c0_8 = arith.constant 0 : index
      %c0_9 = arith.constant 0 : index
      %9 = vector.load %arg5[%c0_8, %c0_9] : memref<1x128xf32, #tpu.memory_space<vmem>>, vector<1x128xf32>
      %10 = vector.shape_cast %9 : vector<1x128xf32> to vector<1x128xf32>
      %11 = vector.broadcast %10 : vector<1x128xf32> to vector<8x128xf32>
      %c0_10 = arith.constant 0 : index
      %c0_11 = arith.constant 0 : index
      %12 = vector.load %arg6[%c0_10, %c0_11] : memref<8x128xf32, #tpu.memory_space<vmem>>, vector<8x128xf32>
      tpu.vector_store %arg6[%c0_10, %c0_11], %11 {strides = array<i32>} : memref<8x128xf32, #tpu.memory_space<vmem>>, vector<8x128xf32>,
    } else {
    }
    %c0 = arith.constant 0 : index
    %c0_1 = arith.constant 0 : index
    %3 = vector.load %arg6[%c0, %c0_1] : memref<8x128xf32, #tpu.memory_space<vmem>>, vector<8x128xf32>
    %c0_2 = arith.constant 0 : index
    %c0_3 = arith.constant 0 : index
    %4 = vector.load %arg3[%c0_2, %c0_3] : memref<8x128xbf16, #tpu.memory_space<vmem>>, vector<8x128xbf16>
    %c0_4 = arith.constant 0 : index
    %c0_5 = arith.constant 0 : index
    %5 = vector.load %arg4[%c0_4, %c0_5] : memref<128x128xbf16, #tpu.memory_space<vmem>>, vector<128x128xbf16>
    %cst = arith.constant dense<0.000000e+00> : vector<8x128xf32>
    %6 = tpu.matmul %4, %5, %cst {dimension_numbers = #tpu.dot_dimension_numbers<[1], [0], [0], [1], [0, 0, 1, 1], [], []>} : vector<8x128xbf16>, vector<128x128xbf16>, vector<8x128xf32> -> vector<8x128xf32>
    %7 = arith.addf %3, %6 : vector<8x128xf32>
    %c0_6 = arith.constant 0 : index
    %c0_7 = arith.constant 0 : index
    %8 = vector.load %arg6[%c0_6, %c0_7] : memref<8x128xf32, #tpu.memory_space<vmem>>, vector<8x128xf32>
    tpu.vector_store %arg6[%c0_6, %c0_7], %7 {strides = array<i32>} : memref<8x128xf32, #tpu.memory_space<vmem>>, vector<8x128xf32>,
    return
  }
  func.func @transform_0(%arg0: i32, %arg1: i32, %arg2: i32) -> (i32, i32) {
    %c0_i32 = arith.constant 0 : i32
    return %arg0, %arg2 : i32, i32
  }
  func.func @transform_1(%arg0: i32, %arg1: i32, %arg2: i32) -> (i32, i32) {
    %c0_i32 = arith.constant 0 : i32
    return %arg2, %arg1 : i32, i32
  }
  func.func @transform_2(%arg0: i32, %arg1: i32, %arg2: i32) -> (i32, i32) {
    %c0_i32 = arith.constant 0 : i32
    %c0_i32_0 = arith.constant 0 : i32
    return %c0_i32, %arg1 : i32, i32
  }
  func.func @transform_3(%arg0: i32, %arg1: i32, %arg2: i32) -> (i32, i32) {
    %c0_i32 = arith.constant 0 : i32
    return %arg0, %arg1 : i32, i32
  }
}

</mosaic_0001>

<llo_original>
// kernel: tpu_custom_call.1
$region0: #{tpu_custom_call.1}
  #allocation0 [shape = 'u32[]', space=smem, size = 0x4, offset = 0x4, fixed_abs, tag = 'smem constant byte address 0x4 - core index']
  #allocation1 [shape = 'u32[144,128]{1,0:T(1,128)}', space=vmem, size = 0x12000, scoped, tag = 'internal scratch']
  %s0 = inlined_call_operand.hbm [shape: bf16[8,128], index: 0, kind: input, shape index: {}]
  %s1 = inlined_call_operand.hbm [shape: bf16[128,128], index: 1, kind: input, shape index: {}]
  %s2 = inlined_call_operand.vmem [shape: f32[1,128], index: 2, kind: input, shape index: {}]
  %s3 = inlined_call_operand.hbm [shape: f32[8,128], index: 3, kind: output, shape index: {}]
  %s4 = sld [smem:[#allocation0]]
  $region34: #{tpu_custom_call.1} parent=0
    _
  %s6 = ssub.s32 1, %s4
  %s7 = scalar_select 0, %s6, %s4
  $region1: #{tpu_custom_call.1} parent=0
    #allocation2 [shape = 'u8[2048]{0}', space=vmem, size = 0x800, scoped, tag = 'input window, operand 0, single buffered']
    #allocation3 [shape = 's32[1]{0}', space=sflag, size = 0x4, scoped, tag = 'scoped memory for tpu_custom_call.1']
    #allocation4 [shape = 's32[1]{0}', space=sflag, size = 0x4, scoped, tag = 'scoped memory for tpu_custom_call.1']
    #allocation5 [shape = 'u8[32768]{0}', space=vmem, size = 0x8000, scoped, tag = 'input window, operand 1, single buffered']
    #allocation6 [shape = 's32[1]{0}', space=sflag, size = 0x4, scoped, tag = 'scoped memory for tpu_custom_call.1']
    #allocation7 [shape = 'u8[4096]{0}', space=vmem, size = 0x1000, scoped, tag = 'output window, operand 0, single buffered']
    %8 = vsyncpa [#allocation3], 0
    %9 = vsyncpa [#allocation6], 0
    %10 = vsyncpa [#allocation4], 0
    // Predicated region
    $region2: #{tpu_custom_call.1} parent=1 // pred_check
      _
    $region3: #{tpu_custom_call.1} parent=1 // pred_check_branch
      %12 = sbr.rel (0) target = $region5
    $region4: #{tpu_custom_call.1} parent=1 // pred_region
      %s14 = ssub.s32 64, 64
      %15 = vsyncadd [#allocation3], %s14
      %s17 = sshll.u32 [#allocation2], 4
      %s18 = int_to_ptr.vmem [resolvable:$true] %s17
      %20 = dma.hbm_to_vmem [thread:$0]  %s0, 64, %s18, [#allocation3]
    $region5: #{tpu_custom_call.1} parent=1 // pred_fallthru
      _
    // Predicated region
    $region6: #{tpu_custom_call.1} parent=1 // pred_check
      _
    $region7: #{tpu_custom_call.1} parent=1 // pred_check_branch
      %22 = sbr.rel (0) target = $region9
    $region8: #{tpu_custom_call.1} parent=1 // pred_region
      %s24 = ssub.s32 1024, 1024
      %25 = vsyncadd [#allocation6], %s24
      %s26 = sshll.u32 [#allocation5], 4
      %s27 = int_to_ptr.vmem [resolvable:$true] %s26
      %32 = dma.hbm_to_vmem [thread:$0]  %s1, 1024, %s27, [#allocation6], 64, 64, 4
    $region9: #{tpu_custom_call.1} parent=1 // pred_fallthru
      _
    // Predicated region
    $region10: #{tpu_custom_call.1} parent=1 // pred_check
      _
    $region11: #{tpu_custom_call.1} parent=1 // pred_check_branch
      %34 = sbr.rel (0) target = $region13
    $region12: #{tpu_custom_call.1} parent=1 // pred_region
      _
    $region13: #{tpu_custom_call.1} parent=1 // pred_fallthru
      _
    // Predicated region
    $region14: #{tpu_custom_call.1} parent=1 // pred_check
      _
    $region15: #{tpu_custom_call.1} parent=1 // pred_check_branch
      %36 = sbr.rel (0) target = $region17
    $region16: #{tpu_custom_call.1} parent=1 // pred_region
      %37 = dma.done [#allocation3], 64
    $region17: #{tpu_custom_call.1} parent=1 // pred_fallthru
      _
    // Predicated region
    $region18: #{tpu_custom_call.1} parent=1 // pred_check
      _
    $region19: #{tpu_custom_call.1} parent=1 // pred_check_branch
      %39 = sbr.rel (0) target = $region21
    $region20: #{tpu_custom_call.1} parent=1 // pred_region
      %40 = dma.done [#allocation6], 1024
    $region21: #{tpu_custom_call.1} parent=1 // pred_fallthru
      _
    %p42 = scmp.eq.s32.totalorder 0, 0
    // Predicated region
    $region22: #{tpu_custom_call.1} parent=1 // pred_check
      %p43 = pneg %p42
    $region23: #{tpu_custom_call.1} parent=1 // pred_check_branch
      %45 = sbr.rel (%p43) target = $region25
    $region24: #{tpu_custom_call.1} parent=1 // pred_region
      %v46 = vld [vmem:[%s2] sm:$0x1]
      %v48 = vlaneseq
      %v49 = vshrl.u32 %v48, 7
      %v50 = vsub.s32 0, %v49
      %v51 = vrot.slane %v46, %v50
      %53 = vst [vmem:[#allocation7] sm:$0xff] %v51
    $region25: #{tpu_custom_call.1} parent=1 // pred_fallthru
      _
    %v54 = vld [vmem:[#allocation7] sm:$0xff]
    %v55 = vld [vmem:[#allocation2] sm:$0xf]
    %v56 = vld [vmem:[#allocation5] sm:$0xf]
    %v57 = vld [vmem:[#allocation5 + $0x4] sm:$0xf]
    %v58 = vld [vmem:[#allocation5 + $0x8] sm:$0xf]
    %v59 = vld [vmem:[#allocation5 + $0xc] sm:$0xf]
    %v60 = vld [vmem:[#allocation5 + $0x10] sm:$0xf]
    %v61 = vld [vmem:[#allocation5 + $0x14] sm:$0xf]
    %v62 = vld [vmem:[#allocation5 + $0x18] sm:$0xf]
    %v63 = vld [vmem:[#allocation5 + $0x1c] sm:$0xf]
    %v64 = vld [vmem:[#allocation5 + $0x20] sm:$0xf]
    %v65 = vld [vmem:[#allocation5 + $0x24] sm:$0xf]
    %v66 = vld [vmem:[#allocation5 + $0x28] sm:$0xf]
    %v67 = vld [vmem:[#allocation5 + $0x2c] sm:$0xf]
    %v68 = vld [vmem:[#allocation5 + $0x30] sm:$0xf]
    %v69 = vld [vmem:[#allocation5 + $0x34] sm:$0xf]
    %v70 = vld [vmem:[#allocation5 + $0x38] sm:$0xf]
    %v71 = vld [vmem:[#allocation5 + $0x3c] sm:$0xf]
    %v88 = vunpack.c.l.b16 %v56
    %v89 = vunpack.c.l.b16 %v57
    %v90 = vunpack.c.l.b16 %v58
    %v91 = vunpack.c.l.b16 %v59
    %v92 = vunpack.c.l.b16 %v60
    %v93 = vunpack.c.l.b16 %v61
    %v94 = vunpack.c.l.b16 %v62
    %v95 = vunpack.c.l.b16 %v63
    %v96 = vunpack.c.l.b16 %v64
    %v97 = vunpack.c.l.b16 %v65
    %v98 = vunpack.c.l.b16 %v66
    %v99 = vunpack.c.l.b16 %v67
    %v100 = vunpack.c.l.b16 %v68
    %v101 = vunpack.c.l.b16 %v69
    %v102 = vunpack.c.l.b16 %v70
    %v103 = vunpack.c.l.b16 %v71
    %v104 = vpack.c.b16 %v89, %v88
    %v105 = vpack.c.b16 %v91, %v90
    %v106 = vpack.c.b16 %v93, %v92
    %v107 = vpack.c.b16 %v95, %v94
    %v108 = vpack.c.b16 %v97, %v96
    %v109 = vpack.c.b16 %v99, %v98
    %v110 = vpack.c.b16 %v101, %v100
    %v111 = vpack.c.b16 %v103, %v102
    %120 = vmatprep.subr.bf16.mxu0 0
    %121 = vmatpush1.bf16.msra.mxu0 %v104
    %122 = vmatprep.subr.bf16.mxu0 0
    %123 = vmatpush1.bf16.msra.mxu0 %v105
    %124 = vmatprep.subr.bf16.mxu0 0
    %125 = vmatpush1.bf16.msra.mxu0 %v106
    %126 = vmatprep.subr.bf16.mxu0 0
    %127 = vmatpush1.bf16.msra.mxu0 %v107
    %128 = vmatprep.subr.bf16.mxu0 0
    %129 = vmatpush1.bf16.msra.mxu0 %v108
    %130 = vmatprep.subr.bf16.mxu0 0
    %131 = vmatpush1.bf16.msra.mxu0 %v109
    %132 = vmatprep.subr.bf16.mxu0 0
    %133 = vmatpush1.bf16.msra.mxu0 %v110
    %134 = vmatprep.subr.bf16.mxu0 0
    %135 = vmatpush1.bf16.msra.mxu0 %v111
    %136 = vmatprep.subr.bf16.mxu0 0
    %137 = vmatpush1.bf16.msra.mxu0 0
    %138 = vmatprep.subr.bf16.mxu0 0
    %139 = vmatpush1.bf16.msra.mxu0 0
    %140 = vmatprep.subr.bf16.mxu0 0
    %141 = vmatpush1.bf16.msra.mxu0 0
    %142 = vmatprep.subr.bf16.mxu0 0
    %143 = vmatpush1.bf16.msra.mxu0 0
    %144 = vmatprep.subr.bf16.mxu0 0
    %145 = vmatpush1.bf16.msra.mxu0 0
    %146 = vmatprep.subr.bf16.mxu0 0
    %147 = vmatpush1.bf16.msra.mxu0 0
    %148 = vmatprep.subr.bf16.mxu0 0
    %149 = vmatpush1.bf16.msra.mxu0 0
    %150 = vmatprep.subr.bf16.mxu0 0
    %151 = vmatpush1.bf16.msra.mxu0 0
    %152 = vmatprep.mubr.bf16.mxu0 0
    %153 = vmatmul.mubr.bf16.gmra.mrb[0].mxu0 %v55
    %v154 = vpop.f32.mrb[0].mxu0
    %v155 = vadd.f32 0.0, %v154
    %v156 = vpop.f32.mrb[0].mxu0
    %v157 = vpop.f32.mrb[0].mxu0
    %v158 = vpop.f32.mrb[0].mxu0
    %159 = vdwg.mxu0
    %v160 = vadd.f32 %v54, %v155
    %161 = vst [vmem:[#allocation7] sm:$0xff] %v160
    // Predicated region
    $region26: #{tpu_custom_call.1} parent=1 // pred_check
      _
    $region27: #{tpu_custom_call.1} parent=1 // pred_check_branch
      %163 = sbr.rel (0) target = $region29
    $region28: #{tpu_custom_call.1} parent=1 // pred_region
      %s165 = ssub.s32 128, 128
      %166 = vsyncadd [#allocation4], %s165
      %s168 = sshll.u32 [#allocation7], 4
      %s169 = int_to_ptr.vmem [resolvable:$true] %s168
      %171 = dma.vmem_to_hbm [thread:$0]  %s169, 128, %s3, [#allocation4]
    $region29: #{tpu_custom_call.1} parent=1 // pred_fallthru
      _
    // Predicated region
    $region30: #{tpu_custom_call.1} parent=1 // pred_check
      _
    $region31: #{tpu_custom_call.1} parent=1 // pred_check_branch
      %173 = sbr.rel (0) target = $region33
    $region32: #{tpu_custom_call.1} parent=1 // pred_region
      %174 = dma.done [#allocation4], 128
    $region33: #{tpu_custom_call.1} parent=1 // pred_fallthru
      _
    %175 = vsyncpa [#allocation3], 1
    %176 = vsyncpa [#allocation6], 1
    %177 = vsyncpa [#allocation4], 1

</llo_original>
